<compile_context>
chip_gen: v6e
topology: v6e:2x2x1
jax: 0.10.0
libtpu: 0.0.40
codegen_flags: <defaults>
</compile_context>

<pallas_src>
import functools

import jax
import jax.numpy as jnp
from jax.experimental import pallas as pl
from jax.experimental.pallas import tpu as pltpu


def _round_up(x, m):
    return ((x + m - 1) // m) * m


def _pad_to(x, shape):
    return jnp.pad(x, [(0, t - s) for s, t in zip(x.shape, shape)])


def _pick_t_block(b_block, width_pad, seq_len, *, budget_bytes=24 << 20):
    """Timesteps per grid step, from a VMEM budget for the pipelined slabs."""
    # U block + output block, double-buffered each, bf16.
    per_step = 2 * (2 * b_block * width_pad * 2)
    t_max = max(1, budget_bytes // per_step)
    t = 1
    for cand in (64, 32, 16, 8, 4, 2, 1):
        if cand <= t_max:
            t = cand
            break
    # Don't pick a block much larger than the sequence itself.
    while t > 1 and (t // 2) >= seq_len:
        t //= 2
    return t


def _asnn_kernel(u_ref, s0_ref, A_ref, out_ref, fin_ref, state_ref,
                 *, eps, t_block, seq_len, apply_tail_mask):
    """One grid step == t_block timesteps of the recurrence for one batch block.

    u_ref:    (Bb, T, Wp)  bf16  precomputed x_t @ V + b for this block
    s0_ref:   (Bb, Wp)     f32   initial state (constant block index)
    A_ref:    (Wp, Wp)     bf16  A' = (W - W.T) - gamma*I
    out_ref:  (Bb, T, Wp)  bf16  output slab for this block of timesteps
    fin_ref:  (Bb, Wp)     f32   final state (constant time index)
    state_ref: VMEM scratch (Bb, Wp) f32, carries the state across time blocks
    """
    tblk = pl.program_id(1)

    @pl.when(tblk == 0)
    def _():
        state_ref[...] = s0_ref[...]

    s = state_ref[...]                          # (Bb, Wp) f32 carried state
    A = A_ref[...]                              # (Wp, Wp) bf16
    u = u_ref[...].astype(jnp.float32)          # (Bb, T, Wp) f32

    # Static unrolled loop over the T timesteps of this block.
    outs = []
    for i in range(t_block):
        pre = jnp.dot(s.astype(A.dtype), A,
                      preferred_element_type=jnp.float32) + u[:, i, :]
        s_new = s + eps * jnp.tanh(pre)
        if apply_tail_mask:
            step = tblk * t_block + i
            s_new = jnp.where(step < seq_len, s_new, s)
        s = s_new
        outs.append(s)

    # One dense (Bb, T, Wp) store instead of T sublane-sliced partial stores.
    out_ref[...] = jnp.stack(outs, axis=1).astype(out_ref.dtype)
    state_ref[...] = s

    @pl.when(tblk == pl.num_programs(1) - 1)
    def _():
        fin_ref[...] = s


def asnn_forward(x, init_state, W, V, b, *, gamma=0.01, eps=0.01,
                 batch_blocks=1):
    """x: [batch, seq, ind]; init_state: [1, batch, width].

    Returns (outputs [batch, seq, width] in bf16, final_state [batch, width] f32).
    """
    B, S, ind = x.shape
    width = W.shape[0]
    f32 = jnp.float32

    # ---- parameter / input glue (plain JAX, runs once, MXU-friendly) -------
    W = W.astype(f32)
    # Fold gamma into the recurrent matrix:  s@(W - W.T) - gamma*s == s@A'.
    A = (W - W.T) - gamma * jnp.eye(width, dtype=f32)

    # Hoist the state-independent projection out of the recurrence.
    U = jnp.einsum("bsi,iw->bsw", x.astype(f32), V.astype(f32),
                   preferred_element_type=f32) + b.astype(f32)   # (B, S, width)

    # ---- padding: lane-dense width, sublane-aligned batch ------------------
    width_pad = _round_up(width, 128)
    B_pad = _round_up(B, 8 * batch_blocks)
    b_block = B_pad // batch_blocks

    t_block = _pick_t_block(b_block, width_pad, S)
    n_t_blocks = pl.cdiv(S, t_block)
    S_pad = n_t_blocks * t_block
    apply_tail_mask = (S_pad != S)

    A_p = _pad_to(A, (width_pad, width_pad)).astype(jnp.bfloat16)
    s0_p = _pad_to(init_state[0].astype(f32), (B_pad, width_pad))
    U_p = _pad_to(U, (B_pad, S_pad, width_pad)).astype(jnp.bfloat16)

    # ---- explicit VMEM budget (v7x has 64 MiB; scoped default is 16/32 MiB) -
    vmem_needed = (
        2 * 2 * b_block * t_block * width_pad * 2   # U + out blocks, 2 bufs, bf16
        + 2 * width_pad * width_pad * 2             # A, 2 bufs, bf16
        + 2 * b_block * width_pad * 4               # s0, 2 bufs, f32
        + 2 * b_block * width_pad * 4               # fin block, 2 bufs, f32
        + b_block * width_pad * 4                   # state scratch, f32
    )
    vmem_limit = int(min(max(2 * vmem_needed, 32 << 20), 64 << 20))

    kernel = functools.partial(
        _asnn_kernel, eps=float(eps), t_block=int(t_block), seq_len=int(S),
        apply_tail_mask=bool(apply_tail_mask))

    outputs_p, final_p = pl.pallas_call(
        kernel,
        out_shape=(
            jax.ShapeDtypeStruct((B_pad, S_pad, width_pad), jnp.bfloat16),
            jax.ShapeDtypeStruct((B_pad, width_pad), jnp.float32),
        ),
        grid_spec=pltpu.PrefetchScalarGridSpec(
            num_scalar_prefetch=0,
            grid=(batch_blocks, n_t_blocks),
            in_specs=[
                pl.BlockSpec((b_block, t_block, width_pad),
                             lambda bb, tt: (bb, tt, 0)),          # U slab
                pl.BlockSpec((b_block, width_pad),
                             lambda bb, tt: (bb, 0)),              # s0
                pl.BlockSpec((width_pad, width_pad),
                             lambda bb, tt: (0, 0)),               # A'
            ],
            out_specs=(
                pl.BlockSpec((b_block, t_block, width_pad),
                             lambda bb, tt: (bb, tt, 0)),          # outputs
                pl.BlockSpec((b_block, width_pad),
                             lambda bb, tt: (bb, 0)),              # final state
            ),
            scratch_shapes=[pltpu.VMEM((b_block, width_pad), jnp.float32)],
        ),
        compiler_params=pltpu.CompilerParams(
            # Batch blocks are independent; the time axis is a recurrence and
            # must stay sequential.
            dimension_semantics=("parallel", "arbitrary"),
            vmem_limit_bytes=vmem_limit,
        ),
    )(U_p, s0_p, A_p)

    outputs = outputs_p[:B, :S, :width]          # bf16
    final_state = final_p[:B, :width]            # f32
    return outputs, final_state


def asnn_reference(x, init_state, W, V, b, *, gamma=0.01, eps=0.01):
    """Pure-JAX f32 reference mirroring the PyTorch loop."""
    A = W - W.T

    def step(state, x_t):
        state = state + eps * jnp.tanh(state @ A - gamma * state + x_t @ V + b)
        return state, state

    s0 = init_state[0]
    xs = jnp.transpose(x, (1, 0, 2))
    final_state, outs = jax.lax.scan(step, s0, xs)
    return jnp.transpose(outs, (1, 0, 2)), final_state


def _xavier_uniform(key, shape, dtype=jnp.float32):
    fan_in, fan_out = shape[0], shape[1]
    limit = jnp.sqrt(6.0 / (fan_in + fan_out))
    return jax.random.uniform(key, shape, dtype, minval=-limit, maxval=limit)


if __name__ == "__main__":
    batch, seq, ind, width = 4, 8, 16, 32
    gamma, eps = 0.01, 0.01

    key = jax.random.PRNGKey(0)
    k_w, k_v, k_x, k_s = jax.random.split(key, 4)

    W = _xavier_uniform(k_w, (width, width))
    V = _xavier_uniform(k_v, (ind, width))
    b = jnp.zeros((width,), jnp.float32)

    x = jax.random.normal(k_x, (batch, seq, ind), jnp.float32)
    init_state = jax.random.normal(k_s, (1, batch, width), jnp.float32)

    outputs, final_state = asnn_forward(x, init_state, W, V, b,
                                        gamma=gamma, eps=eps)
    outputs = jax.block_until_ready(outputs)
    final_state = jax.block_until_ready(final_state)

    ref_out, ref_state = asnn_reference(x, init_state, W, V, b,
                                        gamma=gamma, eps=eps)
    assert outputs.shape == (batch, seq, width)
    assert final_state.shape == (batch, width)
    # Outputs travel through bf16 (matmul operands, U and the stored outputs),
    # so tolerances are loosened relative to the f32 reference; the carried
    # state is kept in f32, so the final state is much tighter.
    assert jnp.allclose(outputs.astype(jnp.float32), ref_out,
                        atol=3e-2, rtol=3e-2)
    assert jnp.allclose(final_state, ref_state, atol=1e-2, rtol=1e-2)

    print("KERNEL_OK")
</pallas_src>

<mosaic_0001>
module attributes {stable_mosaic.version = 11 : i64} {
  func.func @_asnn_kernel(%arg0: i32, %arg1: i32, %arg2: memref<8x8x128xbf16, #tpu.memory_space<vmem>>, %arg3: memref<8x128xf32, #tpu.memory_space<vmem>>, %arg4: memref<128x128xbf16, #tpu.memory_space<vmem>>, %arg5: memref<8x8x128xbf16, #tpu.memory_space<vmem>>, %arg6: memref<8x128xf32, #tpu.memory_space<vmem>>, %arg7: memref<8x128xf32, #tpu.memory_space<vmem>>) attributes {dimension_semantics = [#tpu.dimension_semantics<parallel>, #tpu.dimension_semantics<arbitrary>], iteration_bounds = array<i64: 1, 1>, scalar_prefetch = 0 : i64, scratch_operands = 1 : i64, tpu.core_type = #tpu.core_type<tc>, window_params = [{transform_indices = @transform_0, window_bounds = array<i64: 8, 8, 128>}, {transform_indices = @transform_1, window_bounds = array<i64: 8, 128>}, {pipeline_mode = #tpu.pipeline_mode<synchronous>, transform_indices = @transform_2, window_bounds = array<i64: 128, 128>}, {transform_indices = @transform_3, window_bounds = array<i64: 8, 8, 128>}, {transform_indices = @transform_4, window_bounds = array<i64: 8, 128>}]} {
    %c0_i32 = arith.constant 0 : i32
    %0 = arith.cmpi eq, %arg1, %c0_i32 : i32
    %1 = arith.extui %0 : i1 to i32
    %c0_i32_0 = arith.constant 0 : i32
    %2 = arith.cmpi ne, %1, %c0_i32_0 : i32
    scf.if %2 {
      %c0_29 = arith.constant 0 : index
      %c0_30 = arith.constant 0 : index
      %94 = vector.load %arg3[%c0_29, %c0_30] : memref<8x128xf32, #tpu.memory_space<vmem>>, vector<8x128xf32>
      %c0_31 = arith.constant 0 : index
      %c0_32 = arith.constant 0 : index
      %95 = vector.load %arg7[%c0_31, %c0_32] : memref<8x128xf32, #tpu.memory_space<vmem>>, vector<8x128xf32>
      tpu.vector_store %arg7[%c0_31, %c0_32], %94 {strides = array<i32>} : memref<8x128xf32, #tpu.memory_space<vmem>>, vector<8x128xf32>,
    } else {
    }
    %c0 = arith.constant 0 : index
    %c0_1 = arith.constant 0 : index
    %3 = vector.load %arg7[%c0, %c0_1] : memref<8x128xf32, #tpu.memory_space<vmem>>, vector<8x128xf32>
    %c0_2 = arith.constant 0 : index
    %c0_3 = arith.constant 0 : index
    %4 = vector.load %arg4[%c0_2, %c0_3] : memref<128x128xbf16, #tpu.memory_space<vmem>>, vector<128x128xbf16>
    %c0_4 = arith.constant 0 : index
    %c0_5 = arith.constant 0 : index
    %c0_6 = arith.constant 0 : index
    %5 = vector.load %arg2[%c0_4, %c0_5, %c0_6] : memref<8x8x128xbf16, #tpu.memory_space<vmem>>, vector<8x8x128xbf16>
    %6 = arith.extf %5 : vector<8x8x128xbf16> to vector<8x8x128xf32>
    %7 = arith.truncf %3 : vector<8x128xf32> to vector<8x128xbf16>
    %cst = arith.constant dense<0.000000e+00> : vector<8x128xf32>
    %8 = tpu.matmul %7, %4, %cst {dimension_numbers = #tpu.dot_dimension_numbers<[1], [0], [0], [1], [0, 0, 1, 1], [], []>} : vector<8x128xbf16>, vector<128x128xbf16>, vector<8x128xf32> -> vector<8x128xf32>
    %9 = vector.extract_strided_slice %6 {offsets = [0, 0, 0], sizes = [8, 1, 128], strides = [1, 1, 1]} : vector<8x8x128xf32> to vector<8x1x128xf32>
    %10 = vector.shape_cast %9 : vector<8x1x128xf32> to vector<8x128xf32>
    %11 = arith.addf %8, %10 : vector<8x128xf32>
    %12 = math.tanh %11 : vector<8x128xf32>
    %cst_7 = arith.constant 0.00999999977 : f32
    %13 = vector.broadcast %cst_7 : f32 to vector<8x128xf32>
    %14 = arith.mulf %13, %12 : vector<8x128xf32>
    %15 = arith.addf %3, %14 : vector<8x128xf32>
    %16 = arith.truncf %15 : vector<8x128xf32> to vector<8x128xbf16>
    %cst_8 = arith.constant dense<0.000000e+00> : vector<8x128xf32>
    %17 = tpu.matmul %16, %4, %cst_8 {dimension_numbers = #tpu.dot_dimension_numbers<[1], [0], [0], [1], [0, 0, 1, 1], [], []>} : vector<8x128xbf16>, vector<128x128xbf16>, vector<8x128xf32> -> vector<8x128xf32>
    %18 = vector.extract_strided_slice %6 {offsets = [0, 1, 0], sizes = [8, 1, 128], strides = [1, 1, 1]} : vector<8x8x128xf32> to vector<8x1x128xf32>
    %19 = vector.shape_cast %18 : vector<8x1x128xf32> to vector<8x128xf32>
    %20 = arith.addf %17, %19 : vector<8x128xf32>
    %21 = math.tanh %20 : vector<8x128xf32>
    %cst_9 = arith.constant 0.00999999977 : f32
    %22 = vector.broadcast %cst_9 : f32 to vector<8x128xf32>
    %23 = arith.mulf %22, %21 : vector<8x128xf32>
    %24 = arith.addf %15, %23 : vector<8x128xf32>
    %25 = arith.truncf %24 : vector<8x128xf32> to vector<8x128xbf16>
    %cst_10 = arith.constant dense<0.000000e+00> : vector<8x128xf32>
    %26 = tpu.matmul %25, %4, %cst_10 {dimension_numbers = #tpu.dot_dimension_numbers<[1], [0], [0], [1], [0, 0, 1, 1], [], []>} : vector<8x128xbf16>, vector<128x128xbf16>, vector<8x128xf32> -> vector<8x128xf32>
    %27 = vector.extract_strided_slice %6 {offsets = [0, 2, 0], sizes = [8, 1, 128], strides = [1, 1, 1]} : vector<8x8x128xf32> to vector<8x1x128xf32>
    %28 = vector.shape_cast %27 : vector<8x1x128xf32> to vector<8x128xf32>
    %29 = arith.addf %26, %28 : vector<8x128xf32>
    %30 = math.tanh %29 : vector<8x128xf32>
    %cst_11 = arith.constant 0.00999999977 : f32
    %31 = vector.broadcast %cst_11 : f32 to vector<8x128xf32>
    %32 = arith.mulf %31, %30 : vector<8x128xf32>
    %33 = arith.addf %24, %32 : vector<8x128xf32>
    %34 = arith.truncf %33 : vector<8x128xf32> to vector<8x128xbf16>
    %cst_12 = arith.constant dense<0.000000e+00> : vector<8x128xf32>
    %35 = tpu.matmul %34, %4, %cst_12 {dimension_numbers = #tpu.dot_dimension_numbers<[1], [0], [0], [1], [0, 0, 1, 1], [], []>} : vector<8x128xbf16>, vector<128x128xbf16>, vector<8x128xf32> -> vector<8x128xf32>
    %36 = vector.extract_strided_slice %6 {offsets = [0, 3, 0], sizes = [8, 1, 128], strides = [1, 1, 1]} : vector<8x8x128xf32> to vector<8x1x128xf32>
    %37 = vector.shape_cast %36 : vector<8x1x128xf32> to vector<8x128xf32>
    %38 = arith.addf %35, %37 : vector<8x128xf32>
    %39 = math.tanh %38 : vector<8x128xf32>
    %cst_13 = arith.constant 0.00999999977 : f32
    %40 = vector.broadcast %cst_13 : f32 to vector<8x128xf32>
    %41 = arith.mulf %40, %39 : vector<8x128xf32>
    %42 = arith.addf %33, %41 : vector<8x128xf32>
    %43 = arith.truncf %42 : vector<8x128xf32> to vector<8x128xbf16>
    %cst_14 = arith.constant dense<0.000000e+00> : vector<8x128xf32>
    %44 = tpu.matmul %43, %4, %cst_14 {dimension_numbers = #tpu.dot_dimension_numbers<[1], [0], [0], [1], [0, 0, 1, 1], [], []>} : vector<8x128xbf16>, vector<128x128xbf16>, vector<8x128xf32> -> vector<8x128xf32>
    %45 = vector.extract_strided_slice %6 {offsets = [0, 4, 0], sizes = [8, 1, 128], strides = [1, 1, 1]} : vector<8x8x128xf32> to vector<8x1x128xf32>
    %46 = vector.shape_cast %45 : vector<8x1x128xf32> to vector<8x128xf32>
    %47 = arith.addf %44, %46 : vector<8x128xf32>
    %48 = math.tanh %47 : vector<8x128xf32>
    %cst_15 = arith.constant 0.00999999977 : f32
    %49 = vector.broadcast %cst_15 : f32 to vector<8x128xf32>
    %50 = arith.mulf %49, %48 : vector<8x128xf32>
    %51 = arith.addf %42, %50 : vector<8x128xf32>
    %52 = arith.truncf %51 : vector<8x128xf32> to vector<8x128xbf16>
    %cst_16 = arith.constant dense<0.000000e+00> : vector<8x128xf32>
    %53 = tpu.matmul %52, %4, %cst_16 {dimension_numbers = #tpu.dot_dimension_numbers<[1], [0], [0], [1], [0, 0, 1, 1], [], []>} : vector<8x128xbf16>, vector<128x128xbf16>, vector<8x128xf32> -> vector<8x128xf32>
    %54 = vector.extract_strided_slice %6 {offsets = [0, 5, 0], sizes = [8, 1, 128], strides = [1, 1, 1]} : vector<8x8x128xf32> to vector<8x1x128xf32>
    %55 = vector.shape_cast %54 : vector<8x1x128xf32> to vector<8x128xf32>
    %56 = arith.addf %53, %55 : vector<8x128xf32>
    %57 = math.tanh %56 : vector<8x128xf32>
    %cst_17 = arith.constant 0.00999999977 : f32
    %58 = vector.broadcast %cst_17 : f32 to vector<8x128xf32>
    %59 = arith.mulf %58, %57 : vector<8x128xf32>
    %60 = arith.addf %51, %59 : vector<8x128xf32>
    %61 = arith.truncf %60 : vector<8x128xf32> to vector<8x128xbf16>
    %cst_18 = arith.constant dense<0.000000e+00> : vector<8x128xf32>
    %62 = tpu.matmul %61, %4, %cst_18 {dimension_numbers = #tpu.dot_dimension_numbers<[1], [0], [0], [1], [0, 0, 1, 1], [], []>} : vector<8x128xbf16>, vector<128x128xbf16>, vector<8x128xf32> -> vector<8x128xf32>
    %63 = vector.extract_strided_slice %6 {offsets = [0, 6, 0], sizes = [8, 1, 128], strides = [1, 1, 1]} : vector<8x8x128xf32> to vector<8x1x128xf32>
    %64 = vector.shape_cast %63 : vector<8x1x128xf32> to vector<8x128xf32>
    %65 = arith.addf %62, %64 : vector<8x128xf32>
    %66 = math.tanh %65 : vector<8x128xf32>
    %cst_19 = arith.constant 0.00999999977 : f32
    %67 = vector.broadcast %cst_19 : f32 to vector<8x128xf32>
    %68 = arith.mulf %67, %66 : vector<8x128xf32>
    %69 = arith.addf %60, %68 : vector<8x128xf32>
    %70 = arith.truncf %69 : vector<8x128xf32> to vector<8x128xbf16>
    %cst_20 = arith.constant dense<0.000000e+00> : vector<8x128xf32>
    %71 = tpu.matmul %70, %4, %cst_20 {dimension_numbers = #tpu.dot_dimension_numbers<[1], [0], [0], [1], [0, 0, 1, 1], [], []>} : vector<8x128xbf16>, vector<128x128xbf16>, vector<8x128xf32> -> vector<8x128xf32>
    %72 = vector.extract_strided_slice %6 {offsets = [0, 7, 0], sizes = [8, 1, 128], strides = [1, 1, 1]} : vector<8x8x128xf32> to vector<8x1x128xf32>
    %73 = vector.shape_cast %72 : vector<8x1x128xf32> to vector<8x128xf32>
    %74 = arith.addf %71, %73 : vector<8x128xf32>
    %75 = math.tanh %74 : vector<8x128xf32>
    %cst_21 = arith.constant 0.00999999977 : f32
    %76 = vector.broadcast %cst_21 : f32 to vector<8x128xf32>
    %77 = arith.mulf %76, %75 : vector<8x128xf32>
    %78 = arith.addf %69, %77 : vector<8x128xf32>
    %79 = vector.shape_cast %15 : vector<8x128xf32> to vector<8x1x128xf32>
    %80 = vector.shape_cast %24 : vector<8x128xf32> to vector<8x1x128xf32>
    %81 = vector.shape_cast %33 : vector<8x128xf32> to vector<8x1x128xf32>
    %82 = vector.shape_cast %42 : vector<8x128xf32> to vector<8x1x128xf32>
    %83 = vector.shape_cast %51 : vector<8x128xf32> to vector<8x1x128xf32>
    %84 = vector.shape_cast %60 : vector<8x128xf32> to vector<8x1x128xf32>
    %85 = vector.shape_cast %69 : vector<8x128xf32> to vector<8x1x128xf32>
    %86 = vector.shape_cast %78 : vector<8x128xf32> to vector<8x1x128xf32>
    %87 = tpu.concatenate %79, %80, %81, %82, %83, %84, %85, %86 in 1 : vector<8x1x128xf32>, vector<8x1x128xf32>, vector<8x1x128xf32>, vector<8x1x128xf32>, vector<8x1x128xf32>, vector<8x1x128xf32>, vector<8x1x128xf32>, vector<8x1x128xf32> -> vector<8x8x128xf32>
    %88 = arith.truncf %87 : vector<8x8x128xf32> to vector<8x8x128xbf16>
    %c0_22 = arith.constant 0 : index
    %c0_23 = arith.constant 0 : index
    %c0_24 = arith.constant 0 : index
    %89 = vector.load %arg5[%c0_22, %c0_23, %c0_24] : memref<8x8x128xbf16, #tpu.memory_space<vmem>>, vector<8x8x128xbf16>
    tpu.vector_store %arg5[%c0_22, %c0_23, %c0_24], %88 {strides = array<i32>} : memref<8x8x128xbf16, #tpu.memory_space<vmem>>, vector<8x8x128xbf16>,
    %c0_25 = arith.constant 0 : index
    %c0_26 = arith.constant 0 : index
    %90 = vector.load %arg7[%c0_25, %c0_26] : memref<8x128xf32, #tpu.memory_space<vmem>>, vector<8x128xf32>
    tpu.vector_store %arg7[%c0_25, %c0_26], %78 {strides = array<i32>} : memref<8x128xf32, #tpu.memory_space<vmem>>, vector<8x128xf32>,
    %c0_i32_27 = arith.constant 0 : i32
    %91 = arith.cmpi eq, %arg1, %c0_i32_27 : i32
    %92 = arith.extui %91 : i1 to i32
    %c0_i32_28 = arith.constant 0 : i32
    %93 = arith.cmpi ne, %92, %c0_i32_28 : i32
    scf.if %93 {
      %c0_29 = arith.constant 0 : index
      %c0_30 = arith.constant 0 : index
      %94 = vector.load %arg6[%c0_29, %c0_30] : memref<8x128xf32, #tpu.memory_space<vmem>>, vector<8x128xf32>
      tpu.vector_store %arg6[%c0_29, %c0_30], %78 {strides = array<i32>} : memref<8x128xf32, #tpu.memory_space<vmem>>, vector<8x128xf32>,
    } else {
    }
    return
  }
  func.func @transform_0(%arg0: i32, %arg1: i32) -> (i32, i32, i32) {
    %c0_i32 = arith.constant 0 : i32
    %c0_i32_0 = arith.constant 0 : i32
    return %arg0, %arg1, %c0_i32 : i32, i32, i32
  }
  func.func @transform_1(%arg0: i32, %arg1: i32) -> (i32, i32) {
    %c0_i32 = arith.constant 0 : i32
    %c0_i32_0 = arith.constant 0 : i32
    return %arg0, %c0_i32 : i32, i32
  }
  func.func @transform_2(%arg0: i32, %arg1: i32) -> (i32, i32) {
    %c0_i32 = arith.constant 0 : i32
    %c0_i32_0 = arith.constant 0 : i32
    %c0_i32_1 = arith.constant 0 : i32
    return %c0_i32, %c0_i32_0 : i32, i32
  }
  func.func @transform_3(%arg0: i32, %arg1: i32) -> (i32, i32, i32) {
    %c0_i32 = arith.constant 0 : i32
    %c0_i32_0 = arith.constant 0 : i32
    return %arg0, %arg1, %c0_i32 : i32, i32, i32
  }
  func.func @transform_4(%arg0: i32, %arg1: i32) -> (i32, i32) {
    %c0_i32 = arith.constant 0 : i32
    %c0_i32_0 = arith.constant 0 : i32
    return %arg0, %c0_i32 : i32, i32
  }
}

</mosaic_0001>

<llo_original>
// kernel: tpu_custom_call.1
$region0: #{tpu_custom_call.1}
  #allocation0 [shape = 'u32[]', space=smem, size = 0x4, offset = 0x4, fixed_abs, tag = 'smem constant byte address 0x4 - core index']
  #allocation1 [shape = 'u32[144,128]{1,0:T(1,128)}', space=vmem, size = 0x12000, scoped, tag = 'internal scratch']
  #allocation2 [shape = 'f32[8,128]{1,0:T(8,128)}', space=vmem, size = 0x1000, scoped, tag = 'scratch operand']
  %s0 = inlined_call_operand.hbm [shape: bf16[8,8,128], index: 0, kind: input, shape index: {}]
  %s1 = inlined_call_operand.hbm [shape: f32[8,128], index: 1, kind: input, shape index: {}]
  %s2 = inlined_call_operand.hbm [shape: bf16[128,128], index: 2, kind: input, shape index: {}]
  %s3 = inlined_call_operand.hbm [shape: bf16[8,8,128], index: 3, kind: output, shape index: {0}]
  %s4 = inlined_call_operand.hbm [shape: f32[8,128], index: 4, kind: output, shape index: {1}]
  %5 = xla_tuple %s3, %s4
  %s6 = sld [smem:[#allocation0]]
  $region50: #{tpu_custom_call.1} parent=0
    _
  %s8 = ssub.s32 1, %s6
  %s9 = scalar_select 0, %s8, %s6
  $region1: #{tpu_custom_call.1} parent=0
    #allocation3 [shape = 'u8[16384]{0}', space=vmem, size = 0x4000, scoped, tag = 'input window, operand 0, single buffered']
    #allocation4 [shape = 's32[1]{0}', space=sflag, size = 0x4, scoped, tag = 'scoped memory for tpu_custom_call.1']
    #allocation5 [shape = 's32[1]{0}', space=sflag, size = 0x4, scoped, tag = 'scoped memory for tpu_custom_call.1']
    #allocation6 [shape = 'u8[4096]{0}', space=vmem, size = 0x1000, scoped, tag = 'input window, operand 1, single buffered']
    #allocation7 [shape = 's32[1]{0}', space=sflag, size = 0x4, scoped, tag = 'scoped memory for tpu_custom_call.1']
    #allocation8 [shape = 'u8[32768]{0}', space=vmem, size = 0x8000, scoped, tag = 'input window, operand 2, single buffered']
    #allocation9 [shape = 'u8[16384]{0}', space=vmem, size = 0x4000, scoped, tag = 'output window, operand 0, single buffered']
    #allocation10 [shape = 'u8[4096]{0}', space=vmem, size = 0x1000, scoped, tag = 'output window, operand 1, single buffered']
    #allocation11 [shape = 's32[1]{0}', space=sflag, size = 0x4, scoped, tag = 'scoped memory for tpu_custom_call.1']
    %10 = vsyncpa [#allocation4], 0
    %11 = vsyncpa [#allocation7], 0
    %12 = vsyncpa [#allocation5], 0
    %13 = vsyncpa [#allocation11], 0
    // Predicated region
    $region2: #{tpu_custom_call.1} parent=1 // pred_check
      _
    $region3: #{tpu_custom_call.1} parent=1 // pred_check_branch
      %15 = sbr.rel (0) target = $region5
    $region4: #{tpu_custom_call.1} parent=1 // pred_region
      %s17 = ssub.s32 512, 512
      %18 = vsyncadd [#allocation4], %s17
      %s19 = sshll.u32 [#allocation3], 4
      %s20 = int_to_ptr.vmem [resolvable:$true] %s19
      %25 = dma.hbm_to_vmem [thread:$0]  %s0, 512, %s20, [#allocation4], 64, 64, 4
    $region5: #{tpu_custom_call.1} parent=1 // pred_fallthru
      _
    // Predicated region
    $region6: #{tpu_custom_call.1} parent=1 // pred_check
      _
    $region7: #{tpu_custom_call.1} parent=1 // pred_check_branch
      %27 = sbr.rel (0) target = $region9
    $region8: #{tpu_custom_call.1} parent=1 // pred_region
      %s29 = ssub.s32 128, 128
      %30 = vsyncadd [#allocation7], %s29
      %s32 = sshll.u32 [#allocation6], 4
      %s33 = int_to_ptr.vmem [resolvable:$true] %s32
      %35 = dma.hbm_to_vmem [thread:$0]  %s1, 128, %s33, [#allocation7]
    $region9: #{tpu_custom_call.1} parent=1 // pred_fallthru
      _
    // Predicated region
    $region10: #{tpu_custom_call.1} parent=1 // pred_check
      _
    $region11: #{tpu_custom_call.1} parent=1 // pred_check_branch
      %37 = sbr.rel (0) target = $region13
    $region12: #{tpu_custom_call.1} parent=1 // pred_region
      %s39 = ssub.s32 1024, 1024
      %40 = vsyncadd [#allocation7], %s39
      %s41 = sshll.u32 [#allocation8], 4
      %s42 = int_to_ptr.vmem [resolvable:$true] %s41
      %47 = dma.hbm_to_vmem [thread:$0]  %s2, 1024, %s42, [#allocation7], 64, 64, 4
    $region13: #{tpu_custom_call.1} parent=1 // pred_fallthru
      _
    // Predicated region
    $region14: #{tpu_custom_call.1} parent=1 // pred_check
      _
    $region15: #{tpu_custom_call.1} parent=1 // pred_check_branch
      %49 = sbr.rel (0) target = $region17
    $region16: #{tpu_custom_call.1} parent=1 // pred_region
      %50 = dma.done [#allocation4], 512
    $region17: #{tpu_custom_call.1} parent=1 // pred_fallthru
      _
    // Predicated region
    $region18: #{tpu_custom_call.1} parent=1 // pred_check
      _
    $region19: #{tpu_custom_call.1} parent=1 // pred_check_branch
      %52 = sbr.rel (0) target = $region21
    $region20: #{tpu_custom_call.1} parent=1 // pred_region
      %53 = dma.done [#allocation7], 128
    $region21: #{tpu_custom_call.1} parent=1 // pred_fallthru
      _
    // Predicated region
    $region22: #{tpu_custom_call.1} parent=1 // pred_check
      _
    $region23: #{tpu_custom_call.1} parent=1 // pred_check_branch
      %55 = sbr.rel (0) target = $region25
    $region24: #{tpu_custom_call.1} parent=1 // pred_region
      %56 = dma.done [#allocation7], 1024
    $region25: #{tpu_custom_call.1} parent=1 // pred_fallthru
      _
    %p58 = scmp.eq.s32.totalorder 0, 0
    // Predicated region
    $region26: #{tpu_custom_call.1} parent=1 // pred_check
      %p59 = pneg %p58
    $region27: #{tpu_custom_call.1} parent=1 // pred_check_branch
      %61 = sbr.rel (%p59) target = $region29
    $region28: #{tpu_custom_call.1} parent=1 // pred_region
      %v62 = vld [vmem:[#allocation6] sm:$0xff]
      %63 = vst [vmem:[#allocation2] sm:$0xff] %v62
    $region29: #{tpu_custom_call.1} parent=1 // pred_fallthru
      _
    %v64 = vld [vmem:[#allocation2] sm:$0xff]
    %v65 = vld [vmem:[#allocation8] sm:$0xf]
    %v66 = vld [vmem:[#allocation8 + $0x4] sm:$0xf]
    %v67 = vld [vmem:[#allocation8 + $0x8] sm:$0xf]
    %v68 = vld [vmem:[#allocation8 + $0xc] sm:$0xf]
    %v69 = vld [vmem:[#allocation8 + $0x10] sm:$0xf]
    %v70 = vld [vmem:[#allocation8 + $0x14] sm:$0xf]
    %v71 = vld [vmem:[#allocation8 + $0x18] sm:$0xf]
    %v72 = vld [vmem:[#allocation8 + $0x1c] sm:$0xf]
    %v73 = vld [vmem:[#allocation8 + $0x20] sm:$0xf]
    %v74 = vld [vmem:[#allocation8 + $0x24] sm:$0xf]
    %v75 = vld [vmem:[#allocation8 + $0x28] sm:$0xf]
    %v76 = vld [vmem:[#allocation8 + $0x2c] sm:$0xf]
    %v77 = vld [vmem:[#allocation8 + $0x30] sm:$0xf]
    %v78 = vld [vmem:[#allocation8 + $0x34] sm:$0xf]
    %v79 = vld [vmem:[#allocation8 + $0x38] sm:$0xf]
    %v80 = vld [vmem:[#allocation8 + $0x3c] sm:$0xf]
    %v81 = vld [vmem:[#allocation3] sm:$0xf]
    %v82 = vld [vmem:[#allocation3 + $0x4] sm:$0xf]
    %v83 = vld [vmem:[#allocation3 + $0x8] sm:$0xf]
    %v84 = vld [vmem:[#allocation3 + $0xc] sm:$0xf]
    %v85 = vld [vmem:[#allocation3 + $0x10] sm:$0xf]
    %v86 = vld [vmem:[#allocation3 + $0x14] sm:$0xf]
    %v87 = vld [vmem:[#allocation3 + $0x18] sm:$0xf]
    %v88 = vld [vmem:[#allocation3 + $0x1c] sm:$0xf]
    %v89 = vunpack.c.l.bf16 %v81
    %v90 = vunpack.c.l.bf16 %v82
    %v91 = vunpack.c.l.bf16 %v83
    %v92 = vunpack.c.l.bf16 %v84
    %v93 = vunpack.c.l.bf16 %v85
    %v94 = vunpack.c.l.bf16 %v86
    %v95 = vunpack.c.l.bf16 %v87
    %v96 = vunpack.c.l.bf16 %v88
    %v97 = vpack.c.bf16 %v64, %v64
    %v114 = vunpack.c.l.b16 %v65
    %v115 = vunpack.c.l.b16 %v66
    %v116 = vunpack.c.l.b16 %v67
    %v117 = vunpack.c.l.b16 %v68
    %v118 = vunpack.c.l.b16 %v69
    %v119 = vunpack.c.l.b16 %v70
    %v120 = vunpack.c.l.b16 %v71
    %v121 = vunpack.c.l.b16 %v72
    %v122 = vunpack.c.l.b16 %v73
    %v123 = vunpack.c.l.b16 %v74
    %v124 = vunpack.c.l.b16 %v75
    %v125 = vunpack.c.l.b16 %v76
    %v126 = vunpack.c.l.b16 %v77
    %v127 = vunpack.c.l.b16 %v78
    %v128 = vunpack.c.l.b16 %v79
    %v129 = vunpack.c.l.b16 %v80
    %v130 = vpack.c.b16 %v115, %v114
    %v131 = vpack.c.b16 %v117, %v116
    %v132 = vpack.c.b16 %v119, %v118
    %v133 = vpack.c.b16 %v121, %v120
    %v134 = vpack.c.b16 %v123, %v122
    %v135 = vpack.c.b16 %v125, %v124
    %v136 = vpack.c.b16 %v127, %v126
    %v137 = vpack.c.b16 %v129, %v128
    %v154 = vrot.slane %v90, 7
    %vm155 = vcmask 1041409
    %v156 = vsel %vm155, %v154, %v89
    %v157 = vrot.slane %v91, 6
    %vm158 = vcmask 1042434
    %v159 = vsel %vm158, %v157, %v156
    %v160 = vrot.slane %v92, 5
    %vm161 = vcmask 1043459
    %v162 = vsel %vm161, %v160, %v159
    %v163 = vrot.slane %v93, 4
    %vm164 = vcmask 1044484
    %v165 = vsel %vm164, %v163, %v162
    %v166 = vrot.slane %v94, 3
    %vm167 = vcmask 1045509
    %v168 = vsel %vm167, %v166, %v165
    %v169 = vrot.slane %v95, 2
    %vm170 = vcmask 1046534
    %v171 = vsel %vm170, %v169, %v168
    %v172 = vrot.slane %v96, 1
    %vm173 = vcmask 1047559
    %v174 = vsel %vm173, %v172, %v171
    %176 = vmatprep.subr.bf16.mxu0 0
    %177 = vmatpush1.bf16.msra.mxu0 %v137
    %178 = vmatprep.subr.bf16.mxu0 0
    %179 = vmatpush1.bf16.msra.mxu0 %v136
    %180 = vmatprep.subr.bf16.mxu0 0
    %181 = vmatpush1.bf16.msra.mxu0 %v135
    %182 = vmatprep.subr.bf16.mxu0 0
    %183 = vmatpush1.bf16.msra.mxu0 %v134
    %184 = vmatprep.subr.bf16.mxu0 0
    %185 = vmatpush1.bf16.msra.mxu0 %v133
    %186 = vmatprep.subr.bf16.mxu0 0
    %187 = vmatpush1.bf16.msra.mxu0 %v132
    %188 = vmatprep.subr.bf16.mxu0 0
    %189 = vmatpush1.bf16.msra.mxu0 %v131
    %190 = vmatprep.subr.bf16.mxu0 0
    %191 = vmatpush1.bf16.msra.mxu0 %v130
    %192 = vmatprep.subr.bf16.mxu0 0
    %193 = vmatpush2.bf16.msra.mxu0 0
    %194 = vmatprep.subr.bf16.mxu0 0
    %195 = vmatpush2.bf16.msra.mxu0 0
    %196 = vmatprep.subr.bf16.mxu0 0
    %197 = vmatpush2.bf16.msra.mxu0 0
    %198 = vmatprep.subr.bf16.mxu0 0
    %199 = vmatpush2.bf16.msra.mxu0 0
    %200 = vmatprep.subr.bf16.mxu0 0
    %201 = vmatpush2.bf16.msra.mxu0 0
    %202 = vmatprep.subr.bf16.mxu0 0
    %203 = vmatpush2.bf16.msra.mxu0 0
    %204 = vmatprep.subr.bf16.mxu0 0
    %205 = vmatpush2.bf16.msra.mxu0 0
    %206 = vmatprep.subr.bf16.mxu0 0
    %207 = vmatpush2.bf16.msra.mxu0 0
    %208 = vmatprep.mubr.bf16.mxu0 0
    %209 = vmatmul.mubr.bf16.gmra.mxu0 %v97
    %v210 = vpop.f32.mrf.mxu0
    %v211 = vadd.f32 %v174, %v210
    %v212 = vpop.f32.mrf.mxu0
    %v213 = vpop.f32.mrf.mxu0
    %v214 = vpop.f32.mrf.mxu0
    %215 = vdwg.mxu0
    %v216 = vtanh.pop %v211
    %v217 = vmul.f32 %v216, 0.01
    %v218 = vadd.f32 %v64, %v217
    %v219 = vpack.c.bf16 %v218, %v218
    %v220 = vrot.slane %v89, 1
    %v221 = vsel %vm155, %v90, %v220
    %v222 = vrot.slane %v91, 7
    %v223 = vsel %vm158, %v222, %v221
    %v224 = vrot.slane %v92, 6
    %v225 = vsel %vm161, %v224, %v223
    %v226 = vrot.slane %v93, 5
    %v227 = vsel %vm164, %v226, %v225
    %v228 = vrot.slane %v94, 4
    %v229 = vsel %vm167, %v228, %v227
    %v230 = vrot.slane %v95, 3
    %v231 = vsel %vm170, %v230, %v229
    %v232 = vrot.slane %v96, 2
    %v233 = vsel %vm173, %v232, %v231
    %235 = vmatprep.subr.bf16.mxu0 0
    %236 = vmatpush1.bf16.msra.mxu0 %v137
    %237 = vmatprep.subr.bf16.mxu0 0
    %238 = vmatpush1.bf16.msra.mxu0 %v136
    %239 = vmatprep.subr.bf16.mxu0 0
    %240 = vmatpush1.bf16.msra.mxu0 %v135
    %241 = vmatprep.subr.bf16.mxu0 0
    %242 = vmatpush1.bf16.msra.mxu0 %v134
    %243 = vmatprep.subr.bf16.mxu0 0
    %244 = vmatpush1.bf16.msra.mxu0 %v133
    %245 = vmatprep.subr.bf16.mxu0 0
    %246 = vmatpush1.bf16.msra.mxu0 %v132
    %247 = vmatprep.subr.bf16.mxu0 0
    %248 = vmatpush1.bf16.msra.mxu0 %v131
    %249 = vmatprep.subr.bf16.mxu0 0
    %250 = vmatpush1.bf16.msra.mxu0 %v130
    %251 = vmatprep.subr.bf16.mxu0 0
    %252 = vmatpush2.bf16.msra.mxu0 0
    %253 = vmatprep.subr.bf16.mxu0 0
    %254 = vmatpush2.bf16.msra.mxu0 0
    %255 = vmatprep.subr.bf16.mxu0 0
    %256 = vmatpush2.bf16.msra.mxu0 0
    %257 = vmatprep.subr.bf16.mxu0 0
    %258 = vmatpush2.bf16.msra.mxu0 0
    %259 = vmatprep.subr.bf16.mxu0 0
    %260 = vmatpush2.bf16.msra.mxu0 0
    %261 = vmatprep.subr.bf16.mxu0 0
    %262 = vmatpush2.bf16.msra.mxu0 0
    %263 = vmatprep.subr.bf16.mxu0 0
    %264 = vmatpush2.bf16.msra.mxu0 0
    %265 = vmatprep.subr.bf16.mxu0 0
    %266 = vmatpush2.bf16.msra.mxu0 0
    %267 = vmatprep.mubr.bf16.mxu0 0
    %268 = vmatmul.mubr.bf16.gmra.mxu0 %v219
    %v269 = vpop.f32.mrf.mxu0
    %v270 = vadd.f32 %v233, %v269
    %v271 = vpop.f32.mrf.mxu0
    %v272 = vpop.f32.mrf.mxu0
    %v273 = vpop.f32.mrf.mxu0
    %274 = vdwg.mxu0
    %v275 = vtanh.pop %v270
    %v276 = vmul.f32 %v275, 0.01
    %v277 = vadd.f32 %v218, %v276
    %v278 = vpack.c.bf16 %v277, %v277
    %v279 = vrot.slane %v89, 2
    %v280 = vrot.slane %v90, 1
    %v281 = vsel %vm155, %v280, %v279
    %v282 = vsel %vm158, %v91, %v281
    %v283 = vrot.slane %v92, 7
    %v284 = vsel %vm161, %v283, %v282
    %v285 = vrot.slane %v93, 6
    %v286 = vsel %vm164, %v285, %v284
    %v287 = vrot.slane %v94, 5
    %v288 = vsel %vm167, %v287, %v286
    %v289 = vrot.slane %v95, 4
    %v290 = vsel %vm170, %v289, %v288
    %v291 = vrot.slane %v96, 3
    %v292 = vsel %vm173, %v291, %v290
    %294 = vmatprep.subr.bf16.mxu0 0
    %295 = vmatpush1.bf16.msra.mxu0 %v137
    %296 = vmatprep.subr.bf16.mxu0 0
    %297 = vmatpush1.bf16.msra.mxu0 %v136
    %298 = vmatprep.subr.bf16.mxu0 0
    %299 = vmatpush1.bf16.msra.mxu0 %v135
    %300 = vmatprep.subr.bf16.mxu0 0
    %301 = vmatpush1.bf16.msra.mxu0 %v134
    %302 = vmatprep.subr.bf16.mxu0 0
    %303 = vmatpush1.bf16.msra.mxu0 %v133
    %304 = vmatprep.subr.bf16.mxu0 0
    %305 = vmatpush1.bf16.msra.mxu0 %v132
    %306 = vmatprep.subr.bf16.mxu0 0
    %307 = vmatpush1.bf16.msra.mxu0 %v131
    %308 = vmatprep.subr.bf16.mxu0 0
    %309 = vmatpush1.bf16.msra.mxu0 %v130
    %310 = vmatprep.subr.bf16.mxu0 0
    %311 = vmatpush2.bf16.msra.mxu0 0
    %312 = vmatprep.subr.bf16.mxu0 0
    %313 = vmatpush2.bf16.msra.mxu0 0
    %314 = vmatprep.subr.bf16.mxu0 0
    %315 = vmatpush2.bf16.msra.mxu0 0
    %316 = vmatprep.subr.bf16.mxu0 0
    %317 = vmatpush2.bf16.msra.mxu0 0
    %318 = vmatprep.subr.bf16.mxu0 0
    %319 = vmatpush2.bf16.msra.mxu0 0
    %320 = vmatprep.subr.bf16.mxu0 0
    %321 = vmatpush2.bf16.msra.mxu0 0
    %322 = vmatprep.subr.bf16.mxu0 0
    %323 = vmatpush2.bf16.msra.mxu0 0
    %324 = vmatprep.subr.bf16.mxu0 0
    %325 = vmatpush2.bf16.msra.mxu0 0
    %326 = vmatprep.mubr.bf16.mxu0 0
    %327 = vmatmul.mubr.bf16.gmra.mxu0 %v278
    %v328 = vpop.f32.mrf.mxu0
    %v329 = vadd.f32 %v292, %v328
    %v330 = vpop.f32.mrf.mxu0
    %v331 = vpop.f32.mrf.mxu0
    %v332 = vpop.f32.mrf.mxu0
    %333 = vdwg.mxu0
    %v334 = vtanh.pop %v329
    %v335 = vmul.f32 %v334, 0.01
    %v336 = vadd.f32 %v277, %v335
    %v337 = vpack.c.bf16 %v336, %v336
    %v338 = vrot.slane %v89, 3
    %v339 = vrot.slane %v90, 2
    %v340 = vsel %vm155, %v339, %v338
    %v341 = vrot.slane %v91, 1
    %v342 = vsel %vm158, %v341, %v340
    %v343 = vsel %vm161, %v92, %v342
    %v344 = vrot.slane %v93, 7
    %v345 = vsel %vm164, %v344, %v343
    %v346 = vrot.slane %v94, 6
    %v347 = vsel %vm167, %v346, %v345
    %v348 = vrot.slane %v95, 5
    %v349 = vsel %vm170, %v348, %v347
    %v350 = vrot.slane %v96, 4
    %v351 = vsel %vm173, %v350, %v349
    %353 = vmatprep.subr.bf16.mxu0 0
    %354 = vmatpush1.bf16.msra.mxu0 %v137
    %355 = vmatprep.subr.bf16.mxu0 0
    %356 = vmatpush1.bf16.msra.mxu0 %v136
    %357 = vmatprep.subr.bf16.mxu0 0
    %358 = vmatpush1.bf16.msra.mxu0 %v135
    %359 = vmatprep.subr.bf16.mxu0 0
    %360 = vmatpush1.bf16.msra.mxu0 %v134
    %361 = vmatprep.subr.bf16.mxu0 0
    %362 = vmatpush1.bf16.msra.mxu0 %v133
    %363 = vmatprep.subr.bf16.mxu0 0
    %364 = vmatpush1.bf16.msra.mxu0 %v132
    %365 = vmatprep.subr.bf16.mxu0 0
    %366 = vmatpush1.bf16.msra.mxu0 %v131
    %367 = vmatprep.subr.bf16.mxu0 0
    %368 = vmatpush1.bf16.msra.mxu0 %v130
    %369 = vmatprep.subr.bf16.mxu0 0
    %370 = vmatpush2.bf16.msra.mxu0 0
    %371 = vmatprep.subr.bf16.mxu0 0
    %372 = vmatpush2.bf16.msra.mxu0 0
    %373 = vmatprep.subr.bf16.mxu0 0
    %374 = vmatpush2.bf16.msra.mxu0 0
    %375 = vmatprep.subr.bf16.mxu0 0
    %376 = vmatpush2.bf16.msra.mxu0 0
    %377 = vmatprep.subr.bf16.mxu0 0
    %378 = vmatpush2.bf16.msra.mxu0 0
    %379 = vmatprep.subr.bf16.mxu0 0
    %380 = vmatpush2.bf16.msra.mxu0 0
    %381 = vmatprep.subr.bf16.mxu0 0
    %382 = vmatpush2.bf16.msra.mxu0 0
    %383 = vmatprep.subr.bf16.mxu0 0
    %384 = vmatpush2.bf16.msra.mxu0 0
    %385 = vmatprep.mubr.bf16.mxu0 0
    %386 = vmatmul.mubr.bf16.gmra.mxu0 %v337
    %v387 = vpop.f32.mrf.mxu0
    %v388 = vadd.f32 %v351, %v387
    %v389 = vpop.f32.mrf.mxu0
    %v390 = vpop.f32.mrf.mxu0
    %v391 = vpop.f32.mrf.mxu0
    %392 = vdwg.mxu0
    %v393 = vtanh.pop %v388
    %v394 = vmul.f32 %v393, 0.01
    %v395 = vadd.f32 %v336, %v394
    %v396 = vpack.c.bf16 %v395, %v395
    %v397 = vrot.slane %v89, 4
    %v398 = vrot.slane %v90, 3
    %v399 = vsel %vm155, %v398, %v397
    %v400 = vrot.slane %v91, 2
    %v401 = vsel %vm158, %v400, %v399
    %v402 = vrot.slane %v92, 1
    %v403 = vsel %vm161, %v402, %v401
    %v404 = vsel %vm164, %v93, %v403
    %v405 = vrot.slane %v94, 7
    %v406 = vsel %vm167, %v405, %v404
    %v407 = vrot.slane %v95, 6
    %v408 = vsel %vm170, %v407, %v406
    %v409 = vrot.slane %v96, 5
    %v410 = vsel %vm173, %v409, %v408
    %412 = vmatprep.subr.bf16.mxu0 0
    %413 = vmatpush1.bf16.msra.mxu0 %v137
    %414 = vmatprep.subr.bf16.mxu0 0
    %415 = vmatpush1.bf16.msra.mxu0 %v136
    %416 = vmatprep.subr.bf16.mxu0 0
    %417 = vmatpush1.bf16.msra.mxu0 %v135
    %418 = vmatprep.subr.bf16.mxu0 0
    %419 = vmatpush1.bf16.msra.mxu0 %v134
    %420 = vmatprep.subr.bf16.mxu0 0
    %421 = vmatpush1.bf16.msra.mxu0 %v133
    %422 = vmatprep.subr.bf16.mxu0 0
    %423 = vmatpush1.bf16.msra.mxu0 %v132
    %424 = vmatprep.subr.bf16.mxu0 0
    %425 = vmatpush1.bf16.msra.mxu0 %v131
    %426 = vmatprep.subr.bf16.mxu0 0
    %427 = vmatpush1.bf16.msra.mxu0 %v130
    %428 = vmatprep.subr.bf16.mxu0 0
    %429 = vmatpush2.bf16.msra.mxu0 0
    %430 = vmatprep.subr.bf16.mxu0 0
    %431 = vmatpush2.bf16.msra.mxu0 0
    %432 = vmatprep.subr.bf16.mxu0 0
    %433 = vmatpush2.bf16.msra.mxu0 0
    %434 = vmatprep.subr.bf16.mxu0 0
    %435 = vmatpush2.bf16.msra.mxu0 0
    %436 = vmatprep.subr.bf16.mxu0 0
    %437 = vmatpush2.bf16.msra.mxu0 0
    %438 = vmatprep.subr.bf16.mxu0 0
    %439 = vmatpush2.bf16.msra.mxu0 0
    %440 = vmatprep.subr.bf16.mxu0 0
    %441 = vmatpush2.bf16.msra.mxu0 0
    %442 = vmatprep.subr.bf16.mxu0 0
    %443 = vmatpush2.bf16.msra.mxu0 0
    %444 = vmatprep.mubr.bf16.mxu0 0
    %445 = vmatmul.mubr.bf16.gmra.mxu0 %v396
    %v446 = vpop.f32.mrf.mxu0
    %v447 = vadd.f32 %v410, %v446
    %v448 = vpop.f32.mrf.mxu0
    %v449 = vpop.f32.mrf.mxu0
    %v450 = vpop.f32.mrf.mxu0
    %451 = vdwg.mxu0
    %v452 = vtanh.pop %v447
    %v453 = vmul.f32 %v452, 0.01
    %v454 = vadd.f32 %v395, %v453
    %v455 = vpack.c.bf16 %v454, %v454
    %v456 = vrot.slane %v89, 5
    %v457 = vrot.slane %v90, 4
    %v458 = vsel %vm155, %v457, %v456
    %v459 = vrot.slane %v91, 3
    %v460 = vsel %vm158, %v459, %v458
    %v461 = vrot.slane %v92, 2
    %v462 = vsel %vm161, %v461, %v460
    %v463 = vrot.slane %v93, 1
    %v464 = vsel %vm164, %v463, %v462
    %v465 = vsel %vm167, %v94, %v464
    %v466 = vrot.slane %v95, 7
    %v467 = vsel %vm170, %v466, %v465
    %v468 = vrot.slane %v96, 6
    %v469 = vsel %vm173, %v468, %v467
    %471 = vmatprep.subr.bf16.mxu0 0
    %472 = vmatpush1.bf16.msra.mxu0 %v137
    %473 = vmatprep.subr.bf16.mxu0 0
    %474 = vmatpush1.bf16.msra.mxu0 %v136
    %475 = vmatprep.subr.bf16.mxu0 0
    %476 = vmatpush1.bf16.msra.mxu0 %v135
    %477 = vmatprep.subr.bf16.mxu0 0
    %478 = vmatpush1.bf16.msra.mxu0 %v134
    %479 = vmatprep.subr.bf16.mxu0 0
    %480 = vmatpush1.bf16.msra.mxu0 %v133
    %481 = vmatprep.subr.bf16.mxu0 0
    %482 = vmatpush1.bf16.msra.mxu0 %v132
    %483 = vmatprep.subr.bf16.mxu0 0
    %484 = vmatpush1.bf16.msra.mxu0 %v131
    %485 = vmatprep.subr.bf16.mxu0 0
    %486 = vmatpush1.bf16.msra.mxu0 %v130
    %487 = vmatprep.subr.bf16.mxu0 0
    %488 = vmatpush2.bf16.msra.mxu0 0
    %489 = vmatprep.subr.bf16.mxu0 0
    %490 = vmatpush2.bf16.msra.mxu0 0
    %491 = vmatprep.subr.bf16.mxu0 0
    %492 = vmatpush2.bf16.msra.mxu0 0
    %493 = vmatprep.subr.bf16.mxu0 0
    %494 = vmatpush2.bf16.msra.mxu0 0
    %495 = vmatprep.subr.bf16.mxu0 0
    %496 = vmatpush2.bf16.msra.mxu0 0
    %497 = vmatprep.subr.bf16.mxu0 0
    %498 = vmatpush2.bf16.msra.mxu0 0
    %499 = vmatprep.subr.bf16.mxu0 0
    %500 = vmatpush2.bf16.msra.mxu0 0
    %501 = vmatprep.subr.bf16.mxu0 0
    %502 = vmatpush2.bf16.msra.mxu0 0
    %503 = vmatprep.mubr.bf16.mxu0 0
    %504 = vmatmul.mubr.bf16.gmra.mxu0 %v455
    %v505 = vpop.f32.mrf.mxu0
    %v506 = vadd.f32 %v469, %v505
    %v507 = vpop.f32.mrf.mxu0
    %v508 = vpop.f32.mrf.mxu0
    %v509 = vpop.f32.mrf.mxu0
    %510 = vdwg.mxu0
    %v511 = vtanh.pop %v506
    %v512 = vmul.f32 %v511, 0.01
    %v513 = vadd.f32 %v454, %v512
    %v514 = vpack.c.bf16 %v513, %v513
    %v515 = vrot.slane %v89, 6
    %v516 = vrot.slane %v90, 5
    %v517 = vsel %vm155, %v516, %v515
    %v518 = vrot.slane %v91, 4
    %v519 = vsel %vm158, %v518, %v517
    %v520 = vrot.slane %v92, 3
    %v521 = vsel %vm161, %v520, %v519
    %v522 = vrot.slane %v93, 2
    %v523 = vsel %vm164, %v522, %v521
    %v524 = vrot.slane %v94, 1
    %v525 = vsel %vm167, %v524, %v523
    %v526 = vsel %vm170, %v95, %v525
    %v527 = vrot.slane %v96, 7
    %v528 = vsel %vm173, %v527, %v526
    %530 = vmatprep.subr.bf16.mxu0 0
    %531 = vmatpush1.bf16.msra.mxu0 %v137
    %532 = vmatprep.subr.bf16.mxu0 0
    %533 = vmatpush1.bf16.msra.mxu0 %v136
    %534 = vmatprep.subr.bf16.mxu0 0
    %535 = vmatpush1.bf16.msra.mxu0 %v135
    %536 = vmatprep.subr.bf16.mxu0 0
    %537 = vmatpush1.bf16.msra.mxu0 %v134
    %538 = vmatprep.subr.bf16.mxu0 0
    %539 = vmatpush1.bf16.msra.mxu0 %v133
    %540 = vmatprep.subr.bf16.mxu0 0
    %541 = vmatpush1.bf16.msra.mxu0 %v132
    %542 = vmatprep.subr.bf16.mxu0 0
    %543 = vmatpush1.bf16.msra.mxu0 %v131
    %544 = vmatprep.subr.bf16.mxu0 0
    %545 = vmatpush1.bf16.msra.mxu0 %v130
    %546 = vmatprep.subr.bf16.mxu0 0
    %547 = vmatpush2.bf16.msra.mxu0 0
    %548 = vmatprep.subr.bf16.mxu0 0
    %549 = vmatpush2.bf16.msra.mxu0 0
    %550 = vmatprep.subr.bf16.mxu0 0
    %551 = vmatpush2.bf16.msra.mxu0 0
    %552 = vmatprep.subr.bf16.mxu0 0
    %553 = vmatpush2.bf16.msra.mxu0 0
    %554 = vmatprep.subr.bf16.mxu0 0
    %555 = vmatpush2.bf16.msra.mxu0 0
    %556 = vmatprep.subr.bf16.mxu0 0
    %557 = vmatpush2.bf16.msra.mxu0 0
    %558 = vmatprep.subr.bf16.mxu0 0
    %559 = vmatpush2.bf16.msra.mxu0 0
    %560 = vmatprep.subr.bf16.mxu0 0
    %561 = vmatpush2.bf16.msra.mxu0 0
    %562 = vmatprep.mubr.bf16.mxu0 0
    %563 = vmatmul.mubr.bf16.gmra.mxu0 %v514
    %v564 = vpop.f32.mrf.mxu0
    %v565 = vadd.f32 %v528, %v564
    %v566 = vpop.f32.mrf.mxu0
    %v567 = vpop.f32.mrf.mxu0
    %v568 = vpop.f32.mrf.mxu0
    %569 = vdwg.mxu0
    %v570 = vtanh.pop %v565
    %v571 = vmul.f32 %v570, 0.01
    %v572 = vadd.f32 %v513, %v571
    %v573 = vpack.c.bf16 %v572, %v572
    %v574 = vrot.slane %v89, 7
    %v575 = vrot.slane %v90, 6
    %v576 = vsel %vm155, %v575, %v574
    %v577 = vrot.slane %v91, 5
    %v578 = vsel %vm158, %v577, %v576
    %v579 = vrot.slane %v92, 4
    %v580 = vsel %vm161, %v579, %v578
    %v581 = vrot.slane %v93, 3
    %v582 = vsel %vm164, %v581, %v580
    %v583 = vrot.slane %v94, 2
    %v584 = vsel %vm167, %v583, %v582
    %v585 = vrot.slane %v95, 1
    %v586 = vsel %vm170, %v585, %v584
    %v587 = vsel %vm173, %v96, %v586
    %589 = vmatprep.subr.bf16.mxu0 0
    %590 = vmatpush1.bf16.msra.mxu0 %v137
    %591 = vmatprep.subr.bf16.mxu0 0
    %592 = vmatpush1.bf16.msra.mxu0 %v136
    %593 = vmatprep.subr.bf16.mxu0 0
    %594 = vmatpush1.bf16.msra.mxu0 %v135
    %595 = vmatprep.subr.bf16.mxu0 0
    %596 = vmatpush1.bf16.msra.mxu0 %v134
    %597 = vmatprep.subr.bf16.mxu0 0
    %598 = vmatpush1.bf16.msra.mxu0 %v133
    %599 = vmatprep.subr.bf16.mxu0 0
    %600 = vmatpush1.bf16.msra.mxu0 %v132
    %601 = vmatprep.subr.bf16.mxu0 0
    %602 = vmatpush1.bf16.msra.mxu0 %v131
    %603 = vmatprep.subr.bf16.mxu0 0
    %604 = vmatpush1.bf16.msra.mxu0 %v130
    %605 = vmatprep.subr.bf16.mxu0 0
    %606 = vmatpush2.bf16.msra.mxu0 0
    %607 = vmatprep.subr.bf16.mxu0 0
    %608 = vmatpush2.bf16.msra.mxu0 0
    %609 = vmatprep.subr.bf16.mxu0 0
    %610 = vmatpush2.bf16.msra.mxu0 0
    %611 = vmatprep.subr.bf16.mxu0 0
    %612 = vmatpush2.bf16.msra.mxu0 0
    %613 = vmatprep.subr.bf16.mxu0 0
    %614 = vmatpush2.bf16.msra.mxu0 0
    %615 = vmatprep.subr.bf16.mxu0 0
    %616 = vmatpush2.bf16.msra.mxu0 0
    %617 = vmatprep.subr.bf16.mxu0 0
    %618 = vmatpush2.bf16.msra.mxu0 0
    %619 = vmatprep.subr.bf16.mxu0 0
    %620 = vmatpush2.bf16.msra.mxu0 0
    %621 = vmatprep.mubr.bf16.mxu0 0
    %622 = vmatmul.mubr.bf16.gmra.mxu0 %v573
    %v623 = vpop.f32.mrf.mxu0
    %v624 = vadd.f32 %v587, %v623
    %v625 = vpop.f32.mrf.mxu0
    %v626 = vpop.f32.mrf.mxu0
    %v627 = vpop.f32.mrf.mxu0
    %628 = vdwg.mxu0
    %v629 = vtanh.pop %v624
    %v630 = vmul.f32 %v629, 0.01
    %v631 = vadd.f32 %v572, %v630
    %v633 = vcombine.high %v218, %v218
    %v635 = vunpack.c.l.s4 1966171168
    %v636 = vunpack.c.0.s8 %v635
    %v637 = vlaneseq
    %v638 = vshrl.u32 %v637, 7
    %v639 = vsub.s32 %v636, %v638
    %v640 = vrot.slane %v218, %v639
    %v642 = vunpack.c.l.s4 1966171168
    %v643 = vunpack.c.0.s8 %v642
    %v644 = vlaneseq
    %v645 = vshrl.u32 %v644, 7
    %v646 = vsub.s32 %v643, %v645
    %v647 = vrot.slane %v633, %v646
    %v648 = vcombine.high %v640, %v640
    %v649 = vcombine.high %v647, %v647
    %v651 = vunpack.c.l.s4 1966171168
    %v652 = vunpack.c.0.s8 %v651
    %v653 = vlaneseq
    %v654 = vshrl.u32 %v653, 7
    %v655 = vsub.s32 %v652, %v654
    %v656 = vrot.slane %v640, %v655
    %v658 = vunpack.c.l.s4 1966171168
    %v659 = vunpack.c.0.s8 %v658
    %v660 = vlaneseq
    %v661 = vshrl.u32 %v660, 7
    %v662 = vsub.s32 %v659, %v661
    %v663 = vrot.slane %v647, %v662
    %v665 = vunpack.c.l.s4 1966171168
    %v666 = vunpack.c.0.s8 %v665
    %v667 = vlaneseq
    %v668 = vshrl.u32 %v667, 7
    %v669 = vsub.s32 %v666, %v668
    %v670 = vrot.slane %v648, %v669
    %v672 = vunpack.c.l.s4 1966171168
    %v673 = vunpack.c.0.s8 %v672
    %v674 = vlaneseq
    %v675 = vshrl.u32 %v674, 7
    %v676 = vsub.s32 %v673, %v675
    %v677 = vrot.slane %v649, %v676
    %v678 = vcombine.high %v656, %v656
    %v679 = vcombine.high %v663, %v663
    %v680 = vcombine.high %v670, %v670
    %v681 = vcombine.high %v677, %v677
    %v691 = vcombine.high %v277, %v277
    %v693 = vunpack.c.l.s4 1966171168
    %v694 = vunpack.c.0.s8 %v693
    %v695 = vlaneseq
    %v696 = vshrl.u32 %v695, 7
    %v697 = vsub.s32 %v694, %v696
    %v698 = vrot.slane %v277, %v697
    %v700 = vunpack.c.l.s4 1966171168
    %v701 = vunpack.c.0.s8 %v700
    %v702 = vlaneseq
    %v703 = vshrl.u32 %v702, 7
    %v704 = vsub.s32 %v701, %v703
    %v705 = vrot.slane %v691, %v704
    %v706 = vcombine.high %v698, %v698
    %v707 = vcombine.high %v705, %v705
    %v709 = vunpack.c.l.s4 1966171168
    %v710 = vunpack.c.0.s8 %v709
    %v711 = vlaneseq
    %v712 = vshrl.u32 %v711, 7
    %v713 = vsub.s32 %v710, %v712
    %v714 = vrot.slane %v698, %v713
    %v716 = vunpack.c.l.s4 1966171168
    %v717 = vunpack.c.0.s8 %v716
    %v718 = vlaneseq
    %v719 = vshrl.u32 %v718, 7
    %v720 = vsub.s32 %v717, %v719
    %v721 = vrot.slane %v705, %v720
    %v723 = vunpack.c.l.s4 1966171168
    %v724 = vunpack.c.0.s8 %v723
    %v725 = vlaneseq
    %v726 = vshrl.u32 %v725, 7
    %v727 = vsub.s32 %v724, %v726
    %v728 = vrot.slane %v706, %v727
    %v730 = vunpack.c.l.s4 1966171168
    %v731 = vunpack.c.0.s8 %v730
    %v732 = vlaneseq
    %v733 = vshrl.u32 %v732, 7
    %v734 = vsub.s32 %v731, %v733
    %v735 = vrot.slane %v707, %v734
    %v736 = vcombine.high %v714, %v714
    %v737 = vcombine.high %v721, %v721
    %v738 = vcombine.high %v728, %v728
    %v739 = vcombine.high %v735, %v735
    %v741 = vcombine.high %v336, %v336
    %v743 = vunpack.c.l.s4 1966171168
    %v744 = vunpack.c.0.s8 %v743
    %v745 = vlaneseq
    %v746 = vshrl.u32 %v745, 7
    %v747 = vsub.s32 %v744, %v746
    %v748 = vrot.slane %v336, %v747
    %v750 = vunpack.c.l.s4 1966171168
    %v751 = vunpack.c.0.s8 %v750
    %v752 = vlaneseq
    %v753 = vshrl.u32 %v752, 7
    %v754 = vsub.s32 %v751, %v753
    %v755 = vrot.slane %v741, %v754
    %v756 = vcombine.high %v748, %v748
    %v757 = vcombine.high %v755, %v755
    %v759 = vunpack.c.l.s4 1966171168
    %v760 = vunpack.c.0.s8 %v759
    %v761 = vlaneseq
    %v762 = vshrl.u32 %v761, 7
    %v763 = vsub.s32 %v760, %v762
    %v764 = vrot.slane %v748, %v763
    %v766 = vunpack.c.l.s4 1966171168
    %v767 = vunpack.c.0.s8 %v766
    %v768 = vlaneseq
    %v769 = vshrl.u32 %v768, 7
    %v770 = vsub.s32 %v767, %v769
    %v771 = vrot.slane %v755, %v770
    %v773 = vunpack.c.l.s4 1966171168
    %v774 = vunpack.c.0.s8 %v773
    %v775 = vlaneseq
    %v776 = vshrl.u32 %v775, 7
    %v777 = vsub.s32 %v774, %v776
    %v778 = vrot.slane %v756, %v777
    %v780 = vunpack.c.l.s4 1966171168
    %v781 = vunpack.c.0.s8 %v780
    %v782 = vlaneseq
    %v783 = vshrl.u32 %v782, 7
    %v784 = vsub.s32 %v781, %v783
    %v785 = vrot.slane %v757, %v784
    %v786 = vcombine.high %v764, %v764
    %v787 = vcombine.high %v771, %v771
    %v788 = vcombine.high %v778, %v778
    %v789 = vcombine.high %v785, %v785
    %v791 = vcombine.high %v395, %v395
    %v793 = vunpack.c.l.s4 1966171168
    %v794 = vunpack.c.0.s8 %v793
    %v795 = vlaneseq
    %v796 = vshrl.u32 %v795, 7
    %v797 = vsub.s32 %v794, %v796
    %v798 = vrot.slane %v395, %v797
    %v800 = vunpack.c.l.s4 1966171168
    %v801 = vunpack.c.0.s8 %v800
    %v802 = vlaneseq
    %v803 = vshrl.u32 %v802, 7
    %v804 = vsub.s32 %v801, %v803
    %v805 = vrot.slane %v791, %v804
    %v806 = vcombine.high %v798, %v798
    %v807 = vcombine.high %v805, %v805
    %v809 = vunpack.c.l.s4 1966171168
    %v810 = vunpack.c.0.s8 %v809
    %v811 = vlaneseq
    %v812 = vshrl.u32 %v811, 7
    %v813 = vsub.s32 %v810, %v812
    %v814 = vrot.slane %v798, %v813
    %v816 = vunpack.c.l.s4 1966171168
    %v817 = vunpack.c.0.s8 %v816
    %v818 = vlaneseq
    %v819 = vshrl.u32 %v818, 7
    %v820 = vsub.s32 %v817, %v819
    %v821 = vrot.slane %v805, %v820
    %v823 = vunpack.c.l.s4 1966171168
    %v824 = vunpack.c.0.s8 %v823
    %v825 = vlaneseq
    %v826 = vshrl.u32 %v825, 7
    %v827 = vsub.s32 %v824, %v826
    %v828 = vrot.slane %v806, %v827
    %v830 = vunpack.c.l.s4 1966171168
    %v831 = vunpack.c.0.s8 %v830
    %v832 = vlaneseq
    %v833 = vshrl.u32 %v832, 7
    %v834 = vsub.s32 %v831, %v833
    %v835 = vrot.slane %v807, %v834
    %v836 = vcombine.high %v814, %v814
    %v837 = vcombine.high %v821, %v821
    %v838 = vcombine.high %v828, %v828
    %v839 = vcombine.high %v835, %v835
    %v841 = vcombine.high %v454, %v454
    %v843 = vunpack.c.l.s4 1966171168
    %v844 = vunpack.c.0.s8 %v843
    %v845 = vlaneseq
    %v846 = vshrl.u32 %v845, 7
    %v847 = vsub.s32 %v844, %v846
    %v848 = vrot.slane %v454, %v847
    %v850 = vunpack.c.l.s4 1966171168
    %v851 = vunpack.c.0.s8 %v850
    %v852 = vlaneseq
    %v853 = vshrl.u32 %v852, 7
    %v854 = vsub.s32 %v851, %v853
    %v855 = vrot.slane %v841, %v854
    %v856 = vcombine.high %v848, %v848
    %v857 = vcombine.high %v855, %v855
    %v859 = vunpack.c.l.s4 1966171168
    %v860 = vunpack.c.0.s8 %v859
    %v861 = vlaneseq
    %v862 = vshrl.u32 %v861, 7
    %v863 = vsub.s32 %v860, %v862
    %v864 = vrot.slane %v848, %v863
    %v866 = vunpack.c.l.s4 1966171168
    %v867 = vunpack.c.0.s8 %v866
    %v868 = vlaneseq
    %v869 = vshrl.u32 %v868, 7
    %v870 = vsub.s32 %v867, %v869
    %v871 = vrot.slane %v855, %v870
    %v873 = vunpack.c.l.s4 1966171168
    %v874 = vunpack.c.0.s8 %v873
    %v875 = vlaneseq
    %v876 = vshrl.u32 %v875, 7
    %v877 = vsub.s32 %v874, %v876
    %v878 = vrot.slane %v856, %v877
    %v880 = vunpack.c.l.s4 1966171168
    %v881 = vunpack.c.0.s8 %v880
    %v882 = vlaneseq
    %v883 = vshrl.u32 %v882, 7
    %v884 = vsub.s32 %v881, %v883
    %v885 = vrot.slane %v857, %v884
    %v886 = vcombine.high %v864, %v864
    %v887 = vcombine.high %v871, %v871
    %v888 = vcombine.high %v878, %v878
    %v889 = vcombine.high %v885, %v885
    %v891 = vcombine.high %v513, %v513
    %v893 = vunpack.c.l.s4 1966171168
    %v894 = vunpack.c.0.s8 %v893
    %v895 = vlaneseq
    %v896 = vshrl.u32 %v895, 7
    %v897 = vsub.s32 %v894, %v896
    %v898 = vrot.slane %v513, %v897
    %v900 = vunpack.c.l.s4 1966171168
    %v901 = vunpack.c.0.s8 %v900
    %v902 = vlaneseq
    %v903 = vshrl.u32 %v902, 7
    %v904 = vsub.s32 %v901, %v903
    %v905 = vrot.slane %v891, %v904
    %v906 = vcombine.high %v898, %v898
    %v907 = vcombine.high %v905, %v905
    %v909 = vunpack.c.l.s4 1966171168
    %v910 = vunpack.c.0.s8 %v909
    %v911 = vlaneseq
    %v912 = vshrl.u32 %v911, 7
    %v913 = vsub.s32 %v910, %v912
    %v914 = vrot.slane %v898, %v913
    %v916 = vunpack.c.l.s4 1966171168
    %v917 = vunpack.c.0.s8 %v916
    %v918 = vlaneseq
    %v919 = vshrl.u32 %v918, 7
    %v920 = vsub.s32 %v917, %v919
    %v921 = vrot.slane %v905, %v920
    %v923 = vunpack.c.l.s4 1966171168
    %v924 = vunpack.c.0.s8 %v923
    %v925 = vlaneseq
    %v926 = vshrl.u32 %v925, 7
    %v927 = vsub.s32 %v924, %v926
    %v928 = vrot.slane %v906, %v927
    %v930 = vunpack.c.l.s4 1966171168
    %v931 = vunpack.c.0.s8 %v930
    %v932 = vlaneseq
    %v933 = vshrl.u32 %v932, 7
    %v934 = vsub.s32 %v931, %v933
    %v935 = vrot.slane %v907, %v934
    %v936 = vcombine.high %v914, %v914
    %v937 = vcombine.high %v921, %v921
    %v938 = vcombine.high %v928, %v928
    %v939 = vcombine.high %v935, %v935
    %v941 = vcombine.high %v572, %v572
    %v943 = vunpack.c.l.s4 1966171168
    %v944 = vunpack.c.0.s8 %v943
    %v945 = vlaneseq
    %v946 = vshrl.u32 %v945, 7
    %v947 = vsub.s32 %v944, %v946
    %v948 = vrot.slane %v572, %v947
    %v950 = vunpack.c.l.s4 1966171168
    %v951 = vunpack.c.0.s8 %v950
    %v952 = vlaneseq
    %v953 = vshrl.u32 %v952, 7
    %v954 = vsub.s32 %v951, %v953
    %v955 = vrot.slane %v941, %v954
    %v956 = vcombine.high %v948, %v948
    %v957 = vcombine.high %v955, %v955
    %v959 = vunpack.c.l.s4 1966171168
    %v960 = vunpack.c.0.s8 %v959
    %v961 = vlaneseq
    %v962 = vshrl.u32 %v961, 7
    %v963 = vsub.s32 %v960, %v962
    %v964 = vrot.slane %v948, %v963
    %v966 = vunpack.c.l.s4 1966171168
    %v967 = vunpack.c.0.s8 %v966
    %v968 = vlaneseq
    %v969 = vshrl.u32 %v968, 7
    %v970 = vsub.s32 %v967, %v969
    %v971 = vrot.slane %v955, %v970
    %v973 = vunpack.c.l.s4 1966171168
    %v974 = vunpack.c.0.s8 %v973
    %v975 = vlaneseq
    %v976 = vshrl.u32 %v975, 7
    %v977 = vsub.s32 %v974, %v976
    %v978 = vrot.slane %v956, %v977
    %v980 = vunpack.c.l.s4 1966171168
    %v981 = vunpack.c.0.s8 %v980
    %v982 = vlaneseq
    %v983 = vshrl.u32 %v982, 7
    %v984 = vsub.s32 %v981, %v983
    %v985 = vrot.slane %v957, %v984
    %v986 = vcombine.high %v964, %v964
    %v987 = vcombine.high %v971, %v971
    %v988 = vcombine.high %v978, %v978
    %v989 = vcombine.high %v985, %v985
    %v991 = vcombine.high %v631, %v631
    %v993 = vunpack.c.l.s4 1966171168
    %v994 = vunpack.c.0.s8 %v993
    %v995 = vlaneseq
    %v996 = vshrl.u32 %v995, 7
    %v997 = vsub.s32 %v994, %v996
    %v998 = vrot.slane %v631, %v997
    %v1000 = vunpack.c.l.s4 1966171168
    %v1001 = vunpack.c.0.s8 %v1000
    %v1002 = vlaneseq
    %v1003 = vshrl.u32 %v1002, 7
    %v1004 = vsub.s32 %v1001, %v1003
    %v1005 = vrot.slane %v991, %v1004
    %v1006 = vcombine.high %v998, %v998
    %v1007 = vcombine.high %v1005, %v1005
    %v1009 = vunpack.c.l.s4 1966171168
    %v1010 = vunpack.c.0.s8 %v1009
    %v1011 = vlaneseq
    %v1012 = vshrl.u32 %v1011, 7
    %v1013 = vsub.s32 %v1010, %v1012
    %v1014 = vrot.slane %v998, %v1013
    %v1016 = vunpack.c.l.s4 1966171168
    %v1017 = vunpack.c.0.s8 %v1016
    %v1018 = vlaneseq
    %v1019 = vshrl.u32 %v1018, 7
    %v1020 = vsub.s32 %v1017, %v1019
    %v1021 = vrot.slane %v1005, %v1020
    %v1023 = vunpack.c.l.s4 1966171168
    %v1024 = vunpack.c.0.s8 %v1023
    %v1025 = vlaneseq
    %v1026 = vshrl.u32 %v1025, 7
    %v1027 = vsub.s32 %v1024, %v1026
    %v1028 = vrot.slane %v1006, %v1027
    %v1030 = vunpack.c.l.s4 1966171168
    %v1031 = vunpack.c.0.s8 %v1030
    %v1032 = vlaneseq
    %v1033 = vshrl.u32 %v1032, 7
    %v1034 = vsub.s32 %v1031, %v1033
    %v1035 = vrot.slane %v1007, %v1034
    %v1036 = vcombine.high %v1014, %v1014
    %v1037 = vcombine.high %v1021, %v1021
    %v1038 = vcombine.high %v1028, %v1028
    %v1039 = vcombine.high %v1035, %v1035
    %v1040 = vlaneseq
    %v1041 = vshrl.u32 %v1040, 7
    %v1042 = vsub.s32 0, %v1041
    %v1043 = vrot.slane %v714, %v1042
    %v1044 = vlaneseq
    %v1045 = vshrl.u32 %v1044, 7
    %v1046 = vsub.s32 0, %v1045
    %v1047 = vrot.slane %v728, %v1046
    %v1048 = vlaneseq
    %v1049 = vshrl.u32 %v1048, 7
    %v1050 = vsub.s32 0, %v1049
    %v1051 = vrot.slane %v736, %v1050
    %v1052 = vlaneseq
    %v1053 = vshrl.u32 %v1052, 7
    %v1054 = vsub.s32 0, %v1053
    %v1055 = vrot.slane %v738, %v1054
    %v1056 = vlaneseq
    %v1057 = vshrl.u32 %v1056, 7
    %v1058 = vsub.s32 0, %v1057
    %v1059 = vrot.slane %v721, %v1058
    %v1060 = vlaneseq
    %v1061 = vshrl.u32 %v1060, 7
    %v1062 = vsub.s32 0, %v1061
    %v1063 = vrot.slane %v735, %v1062
    %v1064 = vlaneseq
    %v1065 = vshrl.u32 %v1064, 7
    %v1066 = vsub.s32 0, %v1065
    %v1067 = vrot.slane %v737, %v1066
    %v1068 = vlaneseq
    %v1069 = vshrl.u32 %v1068, 7
    %v1070 = vsub.s32 0, %v1069
    %v1071 = vrot.slane %v739, %v1070
    %v1080 = vlaneseq
    %v1081 = vshrl.u32 %v1080, 7
    %v1082 = vsub.s32 0, %v1081
    %v1083 = vrot.slane %v764, %v1082
    %v1084 = vlaneseq
    %v1085 = vshrl.u32 %v1084, 7
    %v1086 = vsub.s32 0, %v1085
    %v1087 = vrot.slane %v778, %v1086
    %v1088 = vlaneseq
    %v1089 = vshrl.u32 %v1088, 7
    %v1090 = vsub.s32 0, %v1089
    %v1091 = vrot.slane %v786, %v1090
    %v1092 = vlaneseq
    %v1093 = vshrl.u32 %v1092, 7
    %v1094 = vsub.s32 0, %v1093
    %v1095 = vrot.slane %v788, %v1094
    %v1096 = vlaneseq
    %v1097 = vshrl.u32 %v1096, 7
    %v1098 = vsub.s32 0, %v1097
    %v1099 = vrot.slane %v771, %v1098
    %v1100 = vlaneseq
    %v1101 = vshrl.u32 %v1100, 7
    %v1102 = vsub.s32 0, %v1101
    %v1103 = vrot.slane %v785, %v1102
    %v1104 = vlaneseq
    %v1105 = vshrl.u32 %v1104, 7
    %v1106 = vsub.s32 0, %v1105
    %v1107 = vrot.slane %v787, %v1106
    %v1108 = vlaneseq
    %v1109 = vshrl.u32 %v1108, 7
    %v1110 = vsub.s32 0, %v1109
    %v1111 = vrot.slane %v789, %v1110
    %v1120 = vlaneseq
    %v1121 = vshrl.u32 %v1120, 7
    %v1122 = vsub.s32 0, %v1121
    %v1123 = vrot.slane %v814, %v1122
    %v1124 = vlaneseq
    %v1125 = vshrl.u32 %v1124, 7
    %v1126 = vsub.s32 0, %v1125
    %v1127 = vrot.slane %v828, %v1126
    %v1128 = vlaneseq
    %v1129 = vshrl.u32 %v1128, 7
    %v1130 = vsub.s32 0, %v1129
    %v1131 = vrot.slane %v836, %v1130
    %v1132 = vlaneseq
    %v1133 = vshrl.u32 %v1132, 7
    %v1134 = vsub.s32 0, %v1133
    %v1135 = vrot.slane %v838, %v1134
    %v1136 = vlaneseq
    %v1137 = vshrl.u32 %v1136, 7
    %v1138 = vsub.s32 0, %v1137
    %v1139 = vrot.slane %v821, %v1138
    %v1140 = vlaneseq
    %v1141 = vshrl.u32 %v1140, 7
    %v1142 = vsub.s32 0, %v1141
    %v1143 = vrot.slane %v835, %v1142
    %v1144 = vlaneseq
    %v1145 = vshrl.u32 %v1144, 7
    %v1146 = vsub.s32 0, %v1145
    %v1147 = vrot.slane %v837, %v1146
    %v1148 = vlaneseq
    %v1149 = vshrl.u32 %v1148, 7
    %v1150 = vsub.s32 0, %v1149
    %v1151 = vrot.slane %v839, %v1150
    %v1160 = vlaneseq
    %v1161 = vshrl.u32 %v1160, 7
    %v1162 = vsub.s32 0, %v1161
    %v1163 = vrot.slane %v864, %v1162
    %v1164 = vlaneseq
    %v1165 = vshrl.u32 %v1164, 7
    %v1166 = vsub.s32 0, %v1165
    %v1167 = vrot.slane %v878, %v1166
    %v1168 = vlaneseq
    %v1169 = vshrl.u32 %v1168, 7
    %v1170 = vsub.s32 0, %v1169
    %v1171 = vrot.slane %v886, %v1170
    %v1172 = vlaneseq
    %v1173 = vshrl.u32 %v1172, 7
    %v1174 = vsub.s32 0, %v1173
    %v1175 = vrot.slane %v888, %v1174
    %v1176 = vlaneseq
    %v1177 = vshrl.u32 %v1176, 7
    %v1178 = vsub.s32 0, %v1177
    %v1179 = vrot.slane %v871, %v1178
    %v1180 = vlaneseq
    %v1181 = vshrl.u32 %v1180, 7
    %v1182 = vsub.s32 0, %v1181
    %v1183 = vrot.slane %v885, %v1182
    %v1184 = vlaneseq
    %v1185 = vshrl.u32 %v1184, 7
    %v1186 = vsub.s32 0, %v1185
    %v1187 = vrot.slane %v887, %v1186
    %v1188 = vlaneseq
    %v1189 = vshrl.u32 %v1188, 7
    %v1190 = vsub.s32 0, %v1189
    %v1191 = vrot.slane %v889, %v1190
    %v1200 = vlaneseq
    %v1201 = vshrl.u32 %v1200, 7
    %v1202 = vsub.s32 0, %v1201
    %v1203 = vrot.slane %v914, %v1202
    %v1204 = vlaneseq
    %v1205 = vshrl.u32 %v1204, 7
    %v1206 = vsub.s32 0, %v1205
    %v1207 = vrot.slane %v928, %v1206
    %v1208 = vlaneseq
    %v1209 = vshrl.u32 %v1208, 7
    %v1210 = vsub.s32 0, %v1209
    %v1211 = vrot.slane %v936, %v1210
    %v1212 = vlaneseq
    %v1213 = vshrl.u32 %v1212, 7
    %v1214 = vsub.s32 0, %v1213
    %v1215 = vrot.slane %v938, %v1214
    %v1216 = vlaneseq
    %v1217 = vshrl.u32 %v1216, 7
    %v1218 = vsub.s32 0, %v1217
    %v1219 = vrot.slane %v921, %v1218
    %v1220 = vlaneseq
    %v1221 = vshrl.u32 %v1220, 7
    %v1222 = vsub.s32 0, %v1221
    %v1223 = vrot.slane %v935, %v1222
    %v1224 = vlaneseq
    %v1225 = vshrl.u32 %v1224, 7
    %v1226 = vsub.s32 0, %v1225
    %v1227 = vrot.slane %v937, %v1226
    %v1228 = vlaneseq
    %v1229 = vshrl.u32 %v1228, 7
    %v1230 = vsub.s32 0, %v1229
    %v1231 = vrot.slane %v939, %v1230
    %v1240 = vlaneseq
    %v1241 = vshrl.u32 %v1240, 7
    %v1242 = vsub.s32 0, %v1241
    %v1243 = vrot.slane %v964, %v1242
    %v1244 = vlaneseq
    %v1245 = vshrl.u32 %v1244, 7
    %v1246 = vsub.s32 0, %v1245
    %v1247 = vrot.slane %v978, %v1246
    %v1248 = vlaneseq
    %v1249 = vshrl.u32 %v1248, 7
    %v1250 = vsub.s32 0, %v1249
    %v1251 = vrot.slane %v986, %v1250
    %v1252 = vlaneseq
    %v1253 = vshrl.u32 %v1252, 7
    %v1254 = vsub.s32 0, %v1253
    %v1255 = vrot.slane %v988, %v1254
    %v1256 = vlaneseq
    %v1257 = vshrl.u32 %v1256, 7
    %v1258 = vsub.s32 0, %v1257
    %v1259 = vrot.slane %v971, %v1258
    %v1260 = vlaneseq
    %v1261 = vshrl.u32 %v1260, 7
    %v1262 = vsub.s32 0, %v1261
    %v1263 = vrot.slane %v985, %v1262
    %v1264 = vlaneseq
    %v1265 = vshrl.u32 %v1264, 7
    %v1266 = vsub.s32 0, %v1265
    %v1267 = vrot.slane %v987, %v1266
    %v1268 = vlaneseq
    %v1269 = vshrl.u32 %v1268, 7
    %v1270 = vsub.s32 0, %v1269
    %v1271 = vrot.slane %v989, %v1270
    %v1280 = vlaneseq
    %v1281 = vshrl.u32 %v1280, 7
    %v1282 = vsub.s32 0, %v1281
    %v1283 = vrot.slane %v1014, %v1282
    %v1284 = vlaneseq
    %v1285 = vshrl.u32 %v1284, 7
    %v1286 = vsub.s32 0, %v1285
    %v1287 = vrot.slane %v1028, %v1286
    %v1288 = vlaneseq
    %v1289 = vshrl.u32 %v1288, 7
    %v1290 = vsub.s32 0, %v1289
    %v1291 = vrot.slane %v1036, %v1290
    %v1292 = vlaneseq
    %v1293 = vshrl.u32 %v1292, 7
    %v1294 = vsub.s32 0, %v1293
    %v1295 = vrot.slane %v1038, %v1294
    %v1296 = vlaneseq
    %v1297 = vshrl.u32 %v1296, 7
    %v1298 = vsub.s32 0, %v1297
    %v1299 = vrot.slane %v1021, %v1298
    %v1300 = vlaneseq
    %v1301 = vshrl.u32 %v1300, 7
    %v1302 = vsub.s32 0, %v1301
    %v1303 = vrot.slane %v1035, %v1302
    %v1304 = vlaneseq
    %v1305 = vshrl.u32 %v1304, 7
    %v1306 = vsub.s32 0, %v1305
    %v1307 = vrot.slane %v1037, %v1306
    %v1308 = vlaneseq
    %v1309 = vshrl.u32 %v1308, 7
    %v1310 = vsub.s32 0, %v1309
    %v1311 = vrot.slane %v1039, %v1310
    %vm1320 = vcmask 1040384
    %v1321 = vsel %vm1320, %v656, %v1043
    %v1322 = vsel %vm1320, %v670, %v1047
    %v1323 = vsel %vm1320, %v678, %v1051
    %v1324 = vsel %vm1320, %v680, %v1055
    %v1325 = vsel %vm1320, %v663, %v1059
    %v1326 = vsel %vm1320, %v677, %v1063
    %v1327 = vsel %vm1320, %v679, %v1067
    %v1328 = vsel %vm1320, %v681, %v1071
    %vm1329 = vcmask 1041408
    %v1330 = vsel %vm1329, %v1321, %v1083
    %v1331 = vsel %vm1329, %v1322, %v1087
    %v1332 = vsel %vm1329, %v1323, %v1091
    %v1333 = vsel %vm1329, %v1324, %v1095
    %v1334 = vsel %vm1329, %v1325, %v1099
    %v1335 = vsel %vm1329, %v1326, %v1103
    %v1336 = vsel %vm1329, %v1327, %v1107
    %v1337 = vsel %vm1329, %v1328, %v1111
    %vm1338 = vcmask 1042432
    %v1339 = vsel %vm1338, %v1330, %v1123
    %v1340 = vsel %vm1338, %v1331, %v1127
    %v1341 = vsel %vm1338, %v1332, %v1131
    %v1342 = vsel %vm1338, %v1333, %v1135
    %v1343 = vsel %vm1338, %v1334, %v1139
    %v1344 = vsel %vm1338, %v1335, %v1143
    %v1345 = vsel %vm1338, %v1336, %v1147
    %v1346 = vsel %vm1338, %v1337, %v1151
    %vm1347 = vcmask 1043456
    %v1348 = vsel %vm1347, %v1339, %v1163
    %v1349 = vsel %vm1347, %v1340, %v1167
    %v1350 = vsel %vm1347, %v1341, %v1171
    %v1351 = vsel %vm1347, %v1342, %v1175
    %v1352 = vsel %vm1347, %v1343, %v1179
    %v1353 = vsel %vm1347, %v1344, %v1183
    %v1354 = vsel %vm1347, %v1345, %v1187
    %v1355 = vsel %vm1347, %v1346, %v1191
    %vm1356 = vcmask 1044480
    %v1357 = vsel %vm1356, %v1348, %v1203
    %v1358 = vsel %vm1356, %v1349, %v1207
    %v1359 = vsel %vm1356, %v1350, %v1211
    %v1360 = vsel %vm1356, %v1351, %v1215
    %v1361 = vsel %vm1356, %v1352, %v1219
    %v1362 = vsel %vm1356, %v1353, %v1223
    %v1363 = vsel %vm1356, %v1354, %v1227
    %v1364 = vsel %vm1356, %v1355, %v1231
    %vm1365 = vcmask 1045504
    %v1366 = vsel %vm1365, %v1357, %v1243
    %v1367 = vsel %vm1365, %v1358, %v1247
    %v1368 = vsel %vm1365, %v1359, %v1251
    %v1369 = vsel %vm1365, %v1360, %v1255
    %v1370 = vsel %vm1365, %v1361, %v1259
    %v1371 = vsel %vm1365, %v1362, %v1263
    %v1372 = vsel %vm1365, %v1363, %v1267
    %v1373 = vsel %vm1365, %v1364, %v1271
    %vm1374 = vcmask 1046528
    %v1375 = vsel %vm1374, %v1366, %v1283
    %v1376 = vsel %vm1374, %v1367, %v1287
    %v1377 = vsel %vm1374, %v1368, %v1291
    %v1378 = vsel %vm1374, %v1369, %v1295
    %v1379 = vsel %vm1374, %v1370, %v1299
    %v1380 = vsel %vm1374, %v1371, %v1303
    %v1381 = vsel %vm1374, %v1372, %v1307
    %v1382 = vsel %vm1374, %v1373, %v1311
    %v1383 = vpack.c.bf16 %v1375, %v1375
    %v1384 = vpack.c.bf16 %v1376, %v1376
    %v1385 = vpack.c.bf16 %v1377, %v1377
    %v1386 = vpack.c.bf16 %v1378, %v1378
    %v1387 = vpack.c.bf16 %v1379, %v1379
    %v1388 = vpack.c.bf16 %v1380, %v1380
    %v1389 = vpack.c.bf16 %v1381, %v1381
    %v1390 = vpack.c.bf16 %v1382, %v1382
    %1391 = vst [vmem:[#allocation9] sm:$0xf] %v1383
    %1392 = vst [vmem:[#allocation9 + $0x4] sm:$0xf] %v1384
    %1393 = vst [vmem:[#allocation9 + $0x8] sm:$0xf] %v1385
    %1394 = vst [vmem:[#allocation9 + $0xc] sm:$0xf] %v1386
    %1395 = vst [vmem:[#allocation9 + $0x10] sm:$0xf] %v1387
    %1396 = vst [vmem:[#allocation9 + $0x14] sm:$0xf] %v1388
    %1397 = vst [vmem:[#allocation9 + $0x18] sm:$0xf] %v1389
    %1398 = vst [vmem:[#allocation9 + $0x1c] sm:$0xf] %v1390
    %1399 = vst [vmem:[#allocation2] sm:$0xff] %v631
    // Predicated region
    $region30: #{tpu_custom_call.1} parent=1 // pred_check
      %p1400 = pneg %p58
    $region31: #{tpu_custom_call.1} parent=1 // pred_check_branch
      %1402 = sbr.rel (%p1400) target = $region33
    $region32: #{tpu_custom_call.1} parent=1 // pred_region
      %1403 = vst [vmem:[#allocation10] sm:$0xff] %v631
    $region33: #{tpu_custom_call.1} parent=1 // pred_fallthru
      _
    // Predicated region
    $region34: #{tpu_custom_call.1} parent=1 // pred_check
      _
    $region35: #{tpu_custom_call.1} parent=1 // pred_check_branch
      %1405 = sbr.rel (0) target = $region37
    $region36: #{tpu_custom_call.1} parent=1 // pred_region
      %s1407 = ssub.s32 512, 512
      %1408 = vsyncadd [#allocation5], %s1407
      %s1409 = sshll.u32 [#allocation9], 4
      %s1410 = int_to_ptr.vmem [resolvable:$true] %s1409
      %1415 = dma.vmem_to_hbm [thread:$0]  %s1410, 512, %s3, [#allocation5], 64, 64, 4
    $region37: #{tpu_custom_call.1} parent=1 // pred_fallthru
      _
    // Predicated region
    $region38: #{tpu_custom_call.1} parent=1 // pred_check
      _
    $region39: #{tpu_custom_call.1} parent=1 // pred_check_branch
      %1417 = sbr.rel (0) target = $region41
    $region40: #{tpu_custom_call.1} parent=1 // pred_region
      %s1419 = ssub.s32 128, 128
      %1420 = vsyncadd [#allocation11], %s1419
      %s1422 = sshll.u32 [#allocation10], 4
      %s1423 = int_to_ptr.vmem [resolvable:$true] %s1422
      %1425 = dma.vmem_to_hbm [thread:$0]  %s1423, 128, %s4, [#allocation11]
    $region41: #{tpu_custom_call.1} parent=1 // pred_fallthru
      _
    // Predicated region
    $region42: #{tpu_custom_call.1} parent=1 // pred_check
      _
    $region43: #{tpu_custom_call.1} parent=1 // pred_check_branch
      %1427 = sbr.rel (0) target = $region45
    $region44: #{tpu_custom_call.1} parent=1 // pred_region
      %1428 = dma.done [#allocation5], 512
    $region45: #{tpu_custom_call.1} parent=1 // pred_fallthru
      _
    // Predicated region
    $region46: #{tpu_custom_call.1} parent=1 // pred_check
      _
    $region47: #{tpu_custom_call.1} parent=1 // pred_check_branch
      %1430 = sbr.rel (0) target = $region49
    $region48: #{tpu_custom_call.1} parent=1 // pred_region
      %1431 = dma.done [#allocation11], 128
    $region49: #{tpu_custom_call.1} parent=1 // pred_fallthru
      _
    %1432 = vsyncpa [#allocation4], 1
    %1433 = vsyncpa [#allocation7], 1
    %1434 = vsyncpa [#allocation5], 1
    %1435 = vsyncpa [#allocation11], 1

</llo_original>
